<compile_context>
chip_gen: v7x
topology: tpu7x:2x2x1
jax: 0.10.0
libtpu: 0.0.40
codegen_flags: <defaults>
</compile_context>

<pallas_src>
import jax
import jax.numpy as jnp
from jax.experimental import pallas as pl
from jax.experimental.pallas import tpu as pltpu


def _round_up(x, m):
    return ((x + m - 1) // m) * m


def _choose_fc_tile(gv, tile_gv=None, max_tile=8192, target_steps=8):
    """Lane-aligned fc tile + padded GV: ~target_steps grid steps, >=512 lanes."""
    full = _round_up(gv, 128)
    if tile_gv is None:
        t = _round_up(max(512, -(-gv // target_steps)), 128)
    else:
        t = _round_up(tile_gv, 128)
    t = min(t, full, _round_up(max_tile, 128))
    gv_pad = _round_up(gv, t)
    return t, gv_pad


def _lstm_gather_kernel(ids_ref, h_ref, c_ref, whh_ref, bg_ref, wx_hbm,
                        h_out, c_out, hb_out, wx_rows, sem):
    """Embedding-row gather (manual DMA) + LSTMCell, single grid step.

    ids_ref : (B,)     int32 SMEM (scalar prefetch)  token ids, in [0, V)
    h_ref   : (B, H)   f32   previous hidden
    c_ref   : (B, H)   f32   previous cell
    whh_ref : (H, 4H)  f32   W_hh^T
    bg_ref  : (1, 4H)  f32   b_ih + b_hh
    wx_hbm  : (V, 4H)  f32   HBM-resident Emb @ W_ih^T (row-gathered)
    h_out   : (B, H)   f32   h_new
    c_out   : (B, H)   f32   c_new
    hb_out  : (B, H)   bf16  h_new for the fc kernel
    wx_rows : (B, 4H)  f32   VMEM scratch, gathered gate rows
    sem     : (B,)     DMA semaphores
    """
    B, H = h_ref.shape

    # Gather only the B needed rows of the folded input->gate table
    # (exact: row x_t[b] of Emb @ W_ih^T == Emb[x_t[b]] @ W_ih^T).
    for b in range(B):                                   # static unroll, B small
        pltpu.make_async_copy(wx_hbm.at[pl.ds(ids_ref[b], 1)],
                              wx_rows.at[pl.ds(b, 1)],
                              sem.at[b]).start()

    # Hidden-state gate contribution overlaps with the row-gather DMAs.
    g_h = jnp.dot(h_ref[...], whh_ref[...], preferred_element_type=jnp.float32)

    for b in range(B):
        pltpu.make_async_copy(wx_hbm.at[pl.ds(ids_ref[b], 1)],
                              wx_rows.at[pl.ds(b, 1)],
                              sem.at[b]).wait()

    gates = wx_rows[...] + g_h + bg_ref[...]             # (B, 4H), torch gate order

    # Transcendentals once on the full (B, 4H) vreg (EUP), then split i,f,g,o.
    sig = jax.nn.sigmoid(gates)
    th = jnp.tanh(gates)
    i_g = sig[:, 0 * H:1 * H]
    f_g = sig[:, 1 * H:2 * H]
    g_g = th[:, 2 * H:3 * H]
    o_g = sig[:, 3 * H:4 * H]

    c_new = f_g * c_ref[...] + i_g * g_g
    h_new = o_g * jnp.tanh(c_new)

    h_out[...] = h_new
    c_out[...] = c_new
    hb_out[...] = h_new.astype(hb_out.dtype)


def _fc_kernel(hb_ref, wfc_ref, bfc_ref, o_ref):
    """fc head tile: (B,H)bf16 @ (H,T)bf16 -> f32 acc + bias -> bf16 store."""
    o_ref[...] = (jnp.dot(hb_ref[...], wfc_ref[...],
                          preferred_element_type=jnp.float32)
                  + bfc_ref[...]).astype(o_ref.dtype)


class WorkerPallas:
    """JAX/Pallas re-implementation of leak_gan Worker (single-step forward)."""

    def __init__(self, batch_size, vocab_size, embed_dim, hidden_dim,
                 goal_out_size, goal_size, key, tile_gv=None):
        self.batch_size = batch_size
        self.vocab_size = vocab_size
        self.embed_dim = embed_dim
        self.hidden_dim = hidden_dim
        self.goal_out_size = goal_out_size
        self.goal_size = goal_size

        keys = jax.random.split(key, 8)
        std = 0.1
        # nn.init.normal(param, std=0.1) on every parameter (torch parity).
        self.embedding = std * jax.random.normal(keys[0], (vocab_size, embed_dim), jnp.float32)
        self.w_ih = std * jax.random.normal(keys[1], (4 * hidden_dim, embed_dim), jnp.float32)
        self.w_hh = std * jax.random.normal(keys[2], (4 * hidden_dim, hidden_dim), jnp.float32)
        self.b_ih = std * jax.random.normal(keys[3], (4 * hidden_dim,), jnp.float32)
        self.b_hh = std * jax.random.normal(keys[4], (4 * hidden_dim,), jnp.float32)
        self.w_fc = std * jax.random.normal(keys[5], (goal_size * vocab_size, hidden_dim), jnp.float32)
        self.b_fc = std * jax.random.normal(keys[6], (goal_size * vocab_size,), jnp.float32)
        # goal_change exists in __init__ but is unused in forward (kept for parity).
        self.goal_change = std * jax.random.normal(keys[7], (goal_out_size, goal_size), jnp.float32)

        # ---- kernel-side parameter prep (once, at init) ---------------------
        hi = jax.lax.Precision.HIGHEST
        # Folded input->gate table; only B rows of it are DMA'd per step.
        self.w_x = jnp.dot(self.embedding, self.w_ih.T, precision=hi)     # (V, 4H)
        self.w_hh_t = self.w_hh.T                                         # (H, 4H)
        self.b_gate = (self.b_ih + self.b_hh).reshape(1, 4 * hidden_dim)  # (1, 4H)

        # fc head tiling: big lane-dense tiles, GV padded to a tile multiple.
        gv = goal_size * vocab_size
        t, gv_pad = _choose_fc_tile(gv, tile_gv)
        self.tile_gv = t
        self.gv_pad = gv_pad
        self.fc_tiles = gv_pad // t
        self.fc_bufs = 3 if self.fc_tiles >= 3 else 2     # Buffered(3) when grid is deep

        w_fc_t = jnp.pad(self.w_fc.T, ((0, 0), (0, gv_pad - gv)))         # (H, GVpad)
        self.w_fc_t = w_fc_t.astype(jnp.bfloat16)                         # bf16 weight stream
        self.b_fc_row = jnp.pad(self.b_fc, (0, gv_pad - gv)).reshape(1, gv_pad)

        # VMEM plan: all fc streams x buffer depth, 4x headroom, capped at
        # 48 MiB so the same plan fits v7x's 64 MiB VMEM.
        B, H = batch_size, hidden_dim
        tile_bytes = self.fc_bufs * (H * t * 2 + t * 4 + B * t * 2) + 4 * B * H
        self.fc_vmem_limit = int(min(48 * 2 ** 20, max(8 * 2 ** 20, 4 * tile_bytes)))

    def __call__(self, x_t, h_w_t, c_w_t):
        B, V, H, G = self.batch_size, self.vocab_size, self.hidden_dim, self.goal_size
        GV = G * V
        GVp, T = self.gv_pad, self.tile_gv

        # Contract: token ids must lie in [0, V).  Clamp defensively so a bad
        # id can never become an out-of-bounds gather DMA (torch would raise).
        xid = jnp.clip(x_t.astype(jnp.int32).reshape((B,)), 0, V - 1)

        # ---- kernel A: embedding-row gather + LSTMCell (f32 recurrent path) --
        h_new, c_new, h_bf16 = pl.pallas_call(
            _lstm_gather_kernel,
            out_shape=(
                jax.ShapeDtypeStruct((B, H), jnp.float32),     # h_new
                jax.ShapeDtypeStruct((B, H), jnp.float32),     # c_new
                jax.ShapeDtypeStruct((B, H), jnp.bfloat16),    # h_new for fc head
            ),
            grid_spec=pltpu.PrefetchScalarGridSpec(
                num_scalar_prefetch=1,                          # token ids -> SMEM
                grid=(1,),
                in_specs=[
                    pl.BlockSpec((B, H), lambda i, ids: (0, 0)),        # h
                    pl.BlockSpec((B, H), lambda i, ids: (0, 0)),        # c
                    pl.BlockSpec((H, 4 * H), lambda i, ids: (0, 0)),    # W_hh^T
                    pl.BlockSpec((1, 4 * H), lambda i, ids: (0, 0)),    # gate bias
                    pl.BlockSpec(memory_space=pl.ANY),                  # w_x stays in HBM
                ],
                out_specs=[
                    pl.BlockSpec((B, H), lambda i, ids: (0, 0)),
                    pl.BlockSpec((B, H), lambda i, ids: (0, 0)),
                    pl.BlockSpec((B, H), lambda i, ids: (0, 0)),
                ],
                scratch_shapes=[
                    pltpu.VMEM((B, 4 * H), jnp.float32),                # gathered rows
                    pltpu.SemaphoreType.DMA((B,)),
                ],
            ),
            compiler_params=pltpu.CompilerParams(
                dimension_semantics=("arbitrary",)),
            cost_estimate=pl.CostEstimate(
                flops=2 * B * H * 4 * H + 10 * B * H,
                transcendentals=9 * B * H,
                bytes_accessed=4 * (B + 2 * B * H + B * 4 * H + H * 4 * H
                                    + 4 * H + 2 * B * H) + 2 * B * H),
        )(xid, h_w_t, c_w_t, self.w_hh_t, self.b_gate, self.w_x)

        # ---- kernel B: tiled bf16 fc head over the (padded) GV axis ----------
        # LSTM is hoisted out, so the GV axis is fully parallel (v7x megacore).
        fc_mode = pl.Buffered(self.fc_bufs)
        o_pad = pl.pallas_call(
            _fc_kernel,
            out_shape=jax.ShapeDtypeStruct((B, GVp), jnp.bfloat16),
            grid_spec=pltpu.PrefetchScalarGridSpec(
                num_scalar_prefetch=0,
                grid=(GVp // T,),
                in_specs=[
                    pl.BlockSpec((B, H), lambda j: (0, 0)),             # h_new (resident)
                    pl.BlockSpec((H, T), lambda j: (0, j), pipeline_mode=fc_mode),
                    pl.BlockSpec((1, T), lambda j: (0, j), pipeline_mode=fc_mode),
                ],
                out_specs=pl.BlockSpec((B, T), lambda j: (0, j),
                                       pipeline_mode=fc_mode),
            ),
            compiler_params=pltpu.CompilerParams(
                dimension_semantics=("parallel",),
                vmem_limit_bytes=self.fc_vmem_limit),
            cost_estimate=pl.CostEstimate(
                flops=2 * B * H * GVp,
                transcendentals=0,
                bytes_accessed=2 * H * GVp + 4 * GVp + 2 * B * GVp + 2 * B * H),
        )(h_bf16, self.w_fc_t, self.b_fc_row)

        # Drop GV padding; cast back to f32 only for torch-API dtype parity
        # (downstream consumers could take the bf16 slab directly).
        O_tp1 = o_pad[:, :GV].astype(jnp.float32).reshape(B, V, G)
        return O_tp1, h_new, c_new


def _reference(worker, x_t, h, c):
    """Pure-JAX f32 reference implementing the original torch forward."""
    hi = jax.lax.Precision.HIGHEST
    x_emb = jnp.take(worker.embedding, x_t, axis=0)
    gates = (jnp.dot(x_emb, worker.w_ih.T, precision=hi)
             + jnp.dot(h, worker.w_hh.T, precision=hi)
             + worker.b_ih + worker.b_hh)
    H = worker.hidden_dim
    i = jax.nn.sigmoid(gates[:, :H])
    f = jax.nn.sigmoid(gates[:, H:2 * H])
    g = jnp.tanh(gates[:, 2 * H:3 * H])
    o = jax.nn.sigmoid(gates[:, 3 * H:])
    c_new = f * c + i * g
    h_new = o * jnp.tanh(c_new)
    O = jnp.dot(h_new, worker.w_fc.T, precision=hi) + worker.b_fc
    O = O.reshape(worker.batch_size, worker.vocab_size, worker.goal_size)
    return O, h_new, c_new


if __name__ == "__main__":
    key = jax.random.PRNGKey(0)
    k_param, k_x, k_h, k_c = jax.random.split(key, 4)

    batch_size = 8
    vocab_size = 32
    embed_dim = 16
    hidden_dim = 32
    goal_out_size = 64
    goal_size = 16

    worker = WorkerPallas(batch_size, vocab_size, embed_dim, hidden_dim,
                          goal_out_size, goal_size, k_param)

    x_t = jax.random.randint(k_x, (batch_size,), 0, vocab_size, jnp.int32)
    h_w_t = 0.1 * jax.random.normal(k_h, (batch_size, hidden_dim), jnp.float32)
    c_w_t = 0.1 * jax.random.normal(k_c, (batch_size, hidden_dim), jnp.float32)

    O_tp1, h_new, c_new = worker(x_t, h_w_t, c_w_t)
    jax.block_until_ready((O_tp1, h_new, c_new))

    O_ref, h_ref_, c_ref_ = _reference(worker, x_t, h_w_t, c_w_t)
    assert O_tp1.shape == (batch_size, vocab_size, goal_size)
    assert h_new.shape == (batch_size, hidden_dim)
    assert c_new.shape == (batch_size, hidden_dim)
    # Recurrent state follows the f32 gate path -> tight tolerance.
    assert jnp.allclose(h_new, h_ref_, atol=1e-4)
    assert jnp.allclose(c_new, c_ref_, atol=1e-4)
    # fc head uses bf16 weights / bf16 h_new / bf16 output slab -> looser tol.
    assert jnp.allclose(O_tp1, O_ref, atol=1e-2)

    print("KERNEL_OK")
</pallas_src>

<mosaic_0001>
module attributes {stable_mosaic.version = 11 : i64} {
  func.func @_lstm_gather_kernel(%arg0: i32, %arg1: memref<8xi32, #tpu.memory_space<smem>>, %arg2: memref<8x32xf32, #tpu.memory_space<vmem>>, %arg3: memref<8x32xf32, #tpu.memory_space<vmem>>, %arg4: memref<32x128xf32, #tpu.memory_space<vmem>>, %arg5: memref<1x128xf32, #tpu.memory_space<vmem>>, %arg6: memref<32x128xf32, #tpu.memory_space<any>>, %arg7: memref<8x32xf32, #tpu.memory_space<vmem>>, %arg8: memref<8x32xf32, #tpu.memory_space<vmem>>, %arg9: memref<8x32xbf16, #tpu.memory_space<vmem>>, %arg10: memref<8x128xf32, #tpu.memory_space<vmem>>, %arg11: memref<8x!tpu.dma_semaphore, #tpu.memory_space<semaphore_mem>>) attributes {dimension_semantics = [#tpu.dimension_semantics<arbitrary>], iteration_bounds = array<i64: 1>, scalar_prefetch = 1 : i64, scratch_operands = 2 : i64, tpu.core_type = #tpu.core_type<tc>, window_params = [{pipeline_mode = #tpu.pipeline_mode<synchronous>, transform_indices = @transform_0, window_bounds = array<i64: 8, 32>}, {pipeline_mode = #tpu.pipeline_mode<synchronous>, transform_indices = @transform_1, window_bounds = array<i64: 8, 32>}, {pipeline_mode = #tpu.pipeline_mode<synchronous>, transform_indices = @transform_2, window_bounds = array<i64: 32, 128>}, {pipeline_mode = #tpu.pipeline_mode<synchronous>, transform_indices = @transform_3, window_bounds = array<i64: 1, 128>}, {}, {pipeline_mode = #tpu.pipeline_mode<synchronous>, transform_indices = @transform_5, window_bounds = array<i64: 8, 32>}, {pipeline_mode = #tpu.pipeline_mode<synchronous>, transform_indices = @transform_6, window_bounds = array<i64: 8, 32>}, {pipeline_mode = #tpu.pipeline_mode<synchronous>, transform_indices = @transform_7, window_bounds = array<i64: 8, 32>}]} {
    %c0 = arith.constant 0 : index
    %0 = memref.load %arg1[%c0] : memref<8xi32, #tpu.memory_space<smem>>
    %c0_i32 = arith.constant 0 : i32
    %c0_i32_0 = arith.constant 0 : i32
    %1 = tpu.memref_slice %arg6[%0, %c0_i32_0] : memref<32x128xf32, #tpu.memory_space<any>> -> memref<1x128xf32, #tpu.memory_space<any>>
    %c0_i32_1 = arith.constant 0 : i32
    %c0_i32_2 = arith.constant 0 : i32
    %2 = tpu.memref_slice %arg10[%c0_i32_1, %c0_i32_2] : memref<8x128xf32, #tpu.memory_space<vmem>> -> memref<1x128xf32, #tpu.memory_space<vmem>>
    %3 = tpu.memref_slice %arg11[%c0_i32] : memref<8x!tpu.dma_semaphore, #tpu.memory_space<semaphore_mem>> -> memref<1x!tpu.dma_semaphore, #tpu.memory_space<semaphore_mem>>
    %4 = tpu.memref_squeeze %3 : memref<1x!tpu.dma_semaphore, #tpu.memory_space<semaphore_mem>> -> memref<!tpu.dma_semaphore, #tpu.memory_space<semaphore_mem>>
    tpu.enqueue_dma source(%1 : memref<1x128xf32, #tpu.memory_space<any>>) target(%2 : memref<1x128xf32, #tpu.memory_space<vmem>>) target_semaphore(%4 : memref<!tpu.dma_semaphore, #tpu.memory_space<semaphore_mem>>)
    %c1 = arith.constant 1 : index
    %5 = memref.load %arg1[%c1] : memref<8xi32, #tpu.memory_space<smem>>
    %c1_i32 = arith.constant 1 : i32
    %c0_i32_3 = arith.constant 0 : i32
    %6 = tpu.memref_slice %arg6[%5, %c0_i32_3] : memref<32x128xf32, #tpu.memory_space<any>> -> memref<1x128xf32, #tpu.memory_space<any>>
    %c1_i32_4 = arith.constant 1 : i32
    %c0_i32_5 = arith.constant 0 : i32
    %7 = tpu.memref_slice %arg10[%c1_i32_4, %c0_i32_5] : memref<8x128xf32, #tpu.memory_space<vmem>> -> memref<1x128xf32, #tpu.memory_space<vmem>>
    %8 = tpu.memref_slice %arg11[%c1_i32] : memref<8x!tpu.dma_semaphore, #tpu.memory_space<semaphore_mem>> -> memref<1x!tpu.dma_semaphore, #tpu.memory_space<semaphore_mem>>
    %9 = tpu.memref_squeeze %8 : memref<1x!tpu.dma_semaphore, #tpu.memory_space<semaphore_mem>> -> memref<!tpu.dma_semaphore, #tpu.memory_space<semaphore_mem>>
    tpu.enqueue_dma source(%6 : memref<1x128xf32, #tpu.memory_space<any>>) target(%7 : memref<1x128xf32, #tpu.memory_space<vmem>>) target_semaphore(%9 : memref<!tpu.dma_semaphore, #tpu.memory_space<semaphore_mem>>)
    %c2 = arith.constant 2 : index
    %10 = memref.load %arg1[%c2] : memref<8xi32, #tpu.memory_space<smem>>
    %c2_i32 = arith.constant 2 : i32
    %c0_i32_6 = arith.constant 0 : i32
    %11 = tpu.memref_slice %arg6[%10, %c0_i32_6] : memref<32x128xf32, #tpu.memory_space<any>> -> memref<1x128xf32, #tpu.memory_space<any>>
    %c2_i32_7 = arith.constant 2 : i32
    %c0_i32_8 = arith.constant 0 : i32
    %12 = tpu.memref_slice %arg10[%c2_i32_7, %c0_i32_8] : memref<8x128xf32, #tpu.memory_space<vmem>> -> memref<1x128xf32, #tpu.memory_space<vmem>>
    %13 = tpu.memref_slice %arg11[%c2_i32] : memref<8x!tpu.dma_semaphore, #tpu.memory_space<semaphore_mem>> -> memref<1x!tpu.dma_semaphore, #tpu.memory_space<semaphore_mem>>
    %14 = tpu.memref_squeeze %13 : memref<1x!tpu.dma_semaphore, #tpu.memory_space<semaphore_mem>> -> memref<!tpu.dma_semaphore, #tpu.memory_space<semaphore_mem>>
    tpu.enqueue_dma source(%11 : memref<1x128xf32, #tpu.memory_space<any>>) target(%12 : memref<1x128xf32, #tpu.memory_space<vmem>>) target_semaphore(%14 : memref<!tpu.dma_semaphore, #tpu.memory_space<semaphore_mem>>)
    %c3 = arith.constant 3 : index
    %15 = memref.load %arg1[%c3] : memref<8xi32, #tpu.memory_space<smem>>
    %c3_i32 = arith.constant 3 : i32
    %c0_i32_9 = arith.constant 0 : i32
    %16 = tpu.memref_slice %arg6[%15, %c0_i32_9] : memref<32x128xf32, #tpu.memory_space<any>> -> memref<1x128xf32, #tpu.memory_space<any>>
    %c3_i32_10 = arith.constant 3 : i32
    %c0_i32_11 = arith.constant 0 : i32
    %17 = tpu.memref_slice %arg10[%c3_i32_10, %c0_i32_11] : memref<8x128xf32, #tpu.memory_space<vmem>> -> memref<1x128xf32, #tpu.memory_space<vmem>>
    %18 = tpu.memref_slice %arg11[%c3_i32] : memref<8x!tpu.dma_semaphore, #tpu.memory_space<semaphore_mem>> -> memref<1x!tpu.dma_semaphore, #tpu.memory_space<semaphore_mem>>
    %19 = tpu.memref_squeeze %18 : memref<1x!tpu.dma_semaphore, #tpu.memory_space<semaphore_mem>> -> memref<!tpu.dma_semaphore, #tpu.memory_space<semaphore_mem>>
    tpu.enqueue_dma source(%16 : memref<1x128xf32, #tpu.memory_space<any>>) target(%17 : memref<1x128xf32, #tpu.memory_space<vmem>>) target_semaphore(%19 : memref<!tpu.dma_semaphore, #tpu.memory_space<semaphore_mem>>)
    %c4 = arith.constant 4 : index
    %20 = memref.load %arg1[%c4] : memref<8xi32, #tpu.memory_space<smem>>
    %c4_i32 = arith.constant 4 : i32
    %c0_i32_12 = arith.constant 0 : i32
    %21 = tpu.memref_slice %arg6[%20, %c0_i32_12] : memref<32x128xf32, #tpu.memory_space<any>> -> memref<1x128xf32, #tpu.memory_space<any>>
    %c4_i32_13 = arith.constant 4 : i32
    %c0_i32_14 = arith.constant 0 : i32
    %22 = tpu.memref_slice %arg10[%c4_i32_13, %c0_i32_14] : memref<8x128xf32, #tpu.memory_space<vmem>> -> memref<1x128xf32, #tpu.memory_space<vmem>>
    %23 = tpu.memref_slice %arg11[%c4_i32] : memref<8x!tpu.dma_semaphore, #tpu.memory_space<semaphore_mem>> -> memref<1x!tpu.dma_semaphore, #tpu.memory_space<semaphore_mem>>
    %24 = tpu.memref_squeeze %23 : memref<1x!tpu.dma_semaphore, #tpu.memory_space<semaphore_mem>> -> memref<!tpu.dma_semaphore, #tpu.memory_space<semaphore_mem>>
    tpu.enqueue_dma source(%21 : memref<1x128xf32, #tpu.memory_space<any>>) target(%22 : memref<1x128xf32, #tpu.memory_space<vmem>>) target_semaphore(%24 : memref<!tpu.dma_semaphore, #tpu.memory_space<semaphore_mem>>)
    %c5 = arith.constant 5 : index
    %25 = memref.load %arg1[%c5] : memref<8xi32, #tpu.memory_space<smem>>
    %c5_i32 = arith.constant 5 : i32
    %c0_i32_15 = arith.constant 0 : i32
    %26 = tpu.memref_slice %arg6[%25, %c0_i32_15] : memref<32x128xf32, #tpu.memory_space<any>> -> memref<1x128xf32, #tpu.memory_space<any>>
    %c5_i32_16 = arith.constant 5 : i32
    %c0_i32_17 = arith.constant 0 : i32
    %27 = tpu.memref_slice %arg10[%c5_i32_16, %c0_i32_17] : memref<8x128xf32, #tpu.memory_space<vmem>> -> memref<1x128xf32, #tpu.memory_space<vmem>>
    %28 = tpu.memref_slice %arg11[%c5_i32] : memref<8x!tpu.dma_semaphore, #tpu.memory_space<semaphore_mem>> -> memref<1x!tpu.dma_semaphore, #tpu.memory_space<semaphore_mem>>
    %29 = tpu.memref_squeeze %28 : memref<1x!tpu.dma_semaphore, #tpu.memory_space<semaphore_mem>> -> memref<!tpu.dma_semaphore, #tpu.memory_space<semaphore_mem>>
    tpu.enqueue_dma source(%26 : memref<1x128xf32, #tpu.memory_space<any>>) target(%27 : memref<1x128xf32, #tpu.memory_space<vmem>>) target_semaphore(%29 : memref<!tpu.dma_semaphore, #tpu.memory_space<semaphore_mem>>)
    %c6 = arith.constant 6 : index
    %30 = memref.load %arg1[%c6] : memref<8xi32, #tpu.memory_space<smem>>
    %c6_i32 = arith.constant 6 : i32
    %c0_i32_18 = arith.constant 0 : i32
    %31 = tpu.memref_slice %arg6[%30, %c0_i32_18] : memref<32x128xf32, #tpu.memory_space<any>> -> memref<1x128xf32, #tpu.memory_space<any>>
    %c6_i32_19 = arith.constant 6 : i32
    %c0_i32_20 = arith.constant 0 : i32
    %32 = tpu.memref_slice %arg10[%c6_i32_19, %c0_i32_20] : memref<8x128xf32, #tpu.memory_space<vmem>> -> memref<1x128xf32, #tpu.memory_space<vmem>>
    %33 = tpu.memref_slice %arg11[%c6_i32] : memref<8x!tpu.dma_semaphore, #tpu.memory_space<semaphore_mem>> -> memref<1x!tpu.dma_semaphore, #tpu.memory_space<semaphore_mem>>
    %34 = tpu.memref_squeeze %33 : memref<1x!tpu.dma_semaphore, #tpu.memory_space<semaphore_mem>> -> memref<!tpu.dma_semaphore, #tpu.memory_space<semaphore_mem>>
    tpu.enqueue_dma source(%31 : memref<1x128xf32, #tpu.memory_space<any>>) target(%32 : memref<1x128xf32, #tpu.memory_space<vmem>>) target_semaphore(%34 : memref<!tpu.dma_semaphore, #tpu.memory_space<semaphore_mem>>)
    %c7 = arith.constant 7 : index
    %35 = memref.load %arg1[%c7] : memref<8xi32, #tpu.memory_space<smem>>
    %c7_i32 = arith.constant 7 : i32
    %c0_i32_21 = arith.constant 0 : i32
    %36 = tpu.memref_slice %arg6[%35, %c0_i32_21] : memref<32x128xf32, #tpu.memory_space<any>> -> memref<1x128xf32, #tpu.memory_space<any>>
    %c7_i32_22 = arith.constant 7 : i32
    %c0_i32_23 = arith.constant 0 : i32
    %37 = tpu.memref_slice %arg10[%c7_i32_22, %c0_i32_23] : memref<8x128xf32, #tpu.memory_space<vmem>> -> memref<1x128xf32, #tpu.memory_space<vmem>>
    %38 = tpu.memref_slice %arg11[%c7_i32] : memref<8x!tpu.dma_semaphore, #tpu.memory_space<semaphore_mem>> -> memref<1x!tpu.dma_semaphore, #tpu.memory_space<semaphore_mem>>
    %39 = tpu.memref_squeeze %38 : memref<1x!tpu.dma_semaphore, #tpu.memory_space<semaphore_mem>> -> memref<!tpu.dma_semaphore, #tpu.memory_space<semaphore_mem>>
    tpu.enqueue_dma source(%36 : memref<1x128xf32, #tpu.memory_space<any>>) target(%37 : memref<1x128xf32, #tpu.memory_space<vmem>>) target_semaphore(%39 : memref<!tpu.dma_semaphore, #tpu.memory_space<semaphore_mem>>)
    %c0_24 = arith.constant 0 : index
    %c0_25 = arith.constant 0 : index
    %40 = vector.load %arg2[%c0_24, %c0_25] : memref<8x32xf32, #tpu.memory_space<vmem>>, vector<8x32xf32>
    %c0_26 = arith.constant 0 : index
    %c0_27 = arith.constant 0 : index
    %41 = vector.load %arg4[%c0_26, %c0_27] : memref<32x128xf32, #tpu.memory_space<vmem>>, vector<32x128xf32>
    %cst = arith.constant dense<0.000000e+00> : vector<8x128xf32>
    %42 = tpu.matmul %40, %41, %cst {dimension_numbers = #tpu.dot_dimension_numbers<[1], [0], [0], [1], [0, 0, 1, 1], [], []>} : vector<8x32xf32>, vector<32x128xf32>, vector<8x128xf32> -> vector<8x128xf32>
    %c0_28 = arith.constant 0 : index
    %43 = memref.load %arg1[%c0_28] : memref<8xi32, #tpu.memory_space<smem>>
    %c0_i32_29 = arith.constant 0 : i32
    %c0_i32_30 = arith.constant 0 : i32
    %44 = tpu.memref_slice %arg6[%43, %c0_i32_30] : memref<32x128xf32, #tpu.memory_space<any>> -> memref<1x128xf32, #tpu.memory_space<any>>
    %c0_i32_31 = arith.constant 0 : i32
    %c0_i32_32 = arith.constant 0 : i32
    %45 = tpu.memref_slice %arg10[%c0_i32_31, %c0_i32_32] : memref<8x128xf32, #tpu.memory_space<vmem>> -> memref<1x128xf32, #tpu.memory_space<vmem>>
    %46 = tpu.memref_slice %arg11[%c0_i32_29] : memref<8x!tpu.dma_semaphore, #tpu.memory_space<semaphore_mem>> -> memref<1x!tpu.dma_semaphore, #tpu.memory_space<semaphore_mem>>
    %47 = tpu.memref_squeeze %46 : memref<1x!tpu.dma_semaphore, #tpu.memory_space<semaphore_mem>> -> memref<!tpu.dma_semaphore, #tpu.memory_space<semaphore_mem>>
    tpu.wait_dma2 semaphore(%47 : memref<!tpu.dma_semaphore, #tpu.memory_space<semaphore_mem>>) src(%44 : memref<1x128xf32, #tpu.memory_space<any>>) dst(%45 : memref<1x128xf32, #tpu.memory_space<vmem>>)
    %c1_33 = arith.constant 1 : index
    %48 = memref.load %arg1[%c1_33] : memref<8xi32, #tpu.memory_space<smem>>
    %c1_i32_34 = arith.constant 1 : i32
    %c0_i32_35 = arith.constant 0 : i32
    %49 = tpu.memref_slice %arg6[%48, %c0_i32_35] : memref<32x128xf32, #tpu.memory_space<any>> -> memref<1x128xf32, #tpu.memory_space<any>>
    %c1_i32_36 = arith.constant 1 : i32
    %c0_i32_37 = arith.constant 0 : i32
    %50 = tpu.memref_slice %arg10[%c1_i32_36, %c0_i32_37] : memref<8x128xf32, #tpu.memory_space<vmem>> -> memref<1x128xf32, #tpu.memory_space<vmem>>
    %51 = tpu.memref_slice %arg11[%c1_i32_34] : memref<8x!tpu.dma_semaphore, #tpu.memory_space<semaphore_mem>> -> memref<1x!tpu.dma_semaphore, #tpu.memory_space<semaphore_mem>>
    %52 = tpu.memref_squeeze %51 : memref<1x!tpu.dma_semaphore, #tpu.memory_space<semaphore_mem>> -> memref<!tpu.dma_semaphore, #tpu.memory_space<semaphore_mem>>
    tpu.wait_dma2 semaphore(%52 : memref<!tpu.dma_semaphore, #tpu.memory_space<semaphore_mem>>) src(%49 : memref<1x128xf32, #tpu.memory_space<any>>) dst(%50 : memref<1x128xf32, #tpu.memory_space<vmem>>)
    %c2_38 = arith.constant 2 : index
    %53 = memref.load %arg1[%c2_38] : memref<8xi32, #tpu.memory_space<smem>>
    %c2_i32_39 = arith.constant 2 : i32
    %c0_i32_40 = arith.constant 0 : i32
    %54 = tpu.memref_slice %arg6[%53, %c0_i32_40] : memref<32x128xf32, #tpu.memory_space<any>> -> memref<1x128xf32, #tpu.memory_space<any>>
    %c2_i32_41 = arith.constant 2 : i32
    %c0_i32_42 = arith.constant 0 : i32
    %55 = tpu.memref_slice %arg10[%c2_i32_41, %c0_i32_42] : memref<8x128xf32, #tpu.memory_space<vmem>> -> memref<1x128xf32, #tpu.memory_space<vmem>>
    %56 = tpu.memref_slice %arg11[%c2_i32_39] : memref<8x!tpu.dma_semaphore, #tpu.memory_space<semaphore_mem>> -> memref<1x!tpu.dma_semaphore, #tpu.memory_space<semaphore_mem>>
    %57 = tpu.memref_squeeze %56 : memref<1x!tpu.dma_semaphore, #tpu.memory_space<semaphore_mem>> -> memref<!tpu.dma_semaphore, #tpu.memory_space<semaphore_mem>>
    tpu.wait_dma2 semaphore(%57 : memref<!tpu.dma_semaphore, #tpu.memory_space<semaphore_mem>>) src(%54 : memref<1x128xf32, #tpu.memory_space<any>>) dst(%55 : memref<1x128xf32, #tpu.memory_space<vmem>>)
    %c3_43 = arith.constant 3 : index
    %58 = memref.load %arg1[%c3_43] : memref<8xi32, #tpu.memory_space<smem>>
    %c3_i32_44 = arith.constant 3 : i32
    %c0_i32_45 = arith.constant 0 : i32
    %59 = tpu.memref_slice %arg6[%58, %c0_i32_45] : memref<32x128xf32, #tpu.memory_space<any>> -> memref<1x128xf32, #tpu.memory_space<any>>
    %c3_i32_46 = arith.constant 3 : i32
    %c0_i32_47 = arith.constant 0 : i32
    %60 = tpu.memref_slice %arg10[%c3_i32_46, %c0_i32_47] : memref<8x128xf32, #tpu.memory_space<vmem>> -> memref<1x128xf32, #tpu.memory_space<vmem>>
    %61 = tpu.memref_slice %arg11[%c3_i32_44] : memref<8x!tpu.dma_semaphore, #tpu.memory_space<semaphore_mem>> -> memref<1x!tpu.dma_semaphore, #tpu.memory_space<semaphore_mem>>
    %62 = tpu.memref_squeeze %61 : memref<1x!tpu.dma_semaphore, #tpu.memory_space<semaphore_mem>> -> memref<!tpu.dma_semaphore, #tpu.memory_space<semaphore_mem>>
    tpu.wait_dma2 semaphore(%62 : memref<!tpu.dma_semaphore, #tpu.memory_space<semaphore_mem>>) src(%59 : memref<1x128xf32, #tpu.memory_space<any>>) dst(%60 : memref<1x128xf32, #tpu.memory_space<vmem>>)
    %c4_48 = arith.constant 4 : index
    %63 = memref.load %arg1[%c4_48] : memref<8xi32, #tpu.memory_space<smem>>
    %c4_i32_49 = arith.constant 4 : i32
    %c0_i32_50 = arith.constant 0 : i32
    %64 = tpu.memref_slice %arg6[%63, %c0_i32_50] : memref<32x128xf32, #tpu.memory_space<any>> -> memref<1x128xf32, #tpu.memory_space<any>>
    %c4_i32_51 = arith.constant 4 : i32
    %c0_i32_52 = arith.constant 0 : i32
    %65 = tpu.memref_slice %arg10[%c4_i32_51, %c0_i32_52] : memref<8x128xf32, #tpu.memory_space<vmem>> -> memref<1x128xf32, #tpu.memory_space<vmem>>
    %66 = tpu.memref_slice %arg11[%c4_i32_49] : memref<8x!tpu.dma_semaphore, #tpu.memory_space<semaphore_mem>> -> memref<1x!tpu.dma_semaphore, #tpu.memory_space<semaphore_mem>>
    %67 = tpu.memref_squeeze %66 : memref<1x!tpu.dma_semaphore, #tpu.memory_space<semaphore_mem>> -> memref<!tpu.dma_semaphore, #tpu.memory_space<semaphore_mem>>
    tpu.wait_dma2 semaphore(%67 : memref<!tpu.dma_semaphore, #tpu.memory_space<semaphore_mem>>) src(%64 : memref<1x128xf32, #tpu.memory_space<any>>) dst(%65 : memref<1x128xf32, #tpu.memory_space<vmem>>)
    %c5_53 = arith.constant 5 : index
    %68 = memref.load %arg1[%c5_53] : memref<8xi32, #tpu.memory_space<smem>>
    %c5_i32_54 = arith.constant 5 : i32
    %c0_i32_55 = arith.constant 0 : i32
    %69 = tpu.memref_slice %arg6[%68, %c0_i32_55] : memref<32x128xf32, #tpu.memory_space<any>> -> memref<1x128xf32, #tpu.memory_space<any>>
    %c5_i32_56 = arith.constant 5 : i32
    %c0_i32_57 = arith.constant 0 : i32
    %70 = tpu.memref_slice %arg10[%c5_i32_56, %c0_i32_57] : memref<8x128xf32, #tpu.memory_space<vmem>> -> memref<1x128xf32, #tpu.memory_space<vmem>>
    %71 = tpu.memref_slice %arg11[%c5_i32_54] : memref<8x!tpu.dma_semaphore, #tpu.memory_space<semaphore_mem>> -> memref<1x!tpu.dma_semaphore, #tpu.memory_space<semaphore_mem>>
    %72 = tpu.memref_squeeze %71 : memref<1x!tpu.dma_semaphore, #tpu.memory_space<semaphore_mem>> -> memref<!tpu.dma_semaphore, #tpu.memory_space<semaphore_mem>>
    tpu.wait_dma2 semaphore(%72 : memref<!tpu.dma_semaphore, #tpu.memory_space<semaphore_mem>>) src(%69 : memref<1x128xf32, #tpu.memory_space<any>>) dst(%70 : memref<1x128xf32, #tpu.memory_space<vmem>>)
    %c6_58 = arith.constant 6 : index
    %73 = memref.load %arg1[%c6_58] : memref<8xi32, #tpu.memory_space<smem>>
    %c6_i32_59 = arith.constant 6 : i32
    %c0_i32_60 = arith.constant 0 : i32
    %74 = tpu.memref_slice %arg6[%73, %c0_i32_60] : memref<32x128xf32, #tpu.memory_space<any>> -> memref<1x128xf32, #tpu.memory_space<any>>
    %c6_i32_61 = arith.constant 6 : i32
    %c0_i32_62 = arith.constant 0 : i32
    %75 = tpu.memref_slice %arg10[%c6_i32_61, %c0_i32_62] : memref<8x128xf32, #tpu.memory_space<vmem>> -> memref<1x128xf32, #tpu.memory_space<vmem>>
    %76 = tpu.memref_slice %arg11[%c6_i32_59] : memref<8x!tpu.dma_semaphore, #tpu.memory_space<semaphore_mem>> -> memref<1x!tpu.dma_semaphore, #tpu.memory_space<semaphore_mem>>
    %77 = tpu.memref_squeeze %76 : memref<1x!tpu.dma_semaphore, #tpu.memory_space<semaphore_mem>> -> memref<!tpu.dma_semaphore, #tpu.memory_space<semaphore_mem>>
    tpu.wait_dma2 semaphore(%77 : memref<!tpu.dma_semaphore, #tpu.memory_space<semaphore_mem>>) src(%74 : memref<1x128xf32, #tpu.memory_space<any>>) dst(%75 : memref<1x128xf32, #tpu.memory_space<vmem>>)
    %c7_63 = arith.constant 7 : index
    %78 = memref.load %arg1[%c7_63] : memref<8xi32, #tpu.memory_space<smem>>
    %c7_i32_64 = arith.constant 7 : i32
    %c0_i32_65 = arith.constant 0 : i32
    %79 = tpu.memref_slice %arg6[%78, %c0_i32_65] : memref<32x128xf32, #tpu.memory_space<any>> -> memref<1x128xf32, #tpu.memory_space<any>>
    %c7_i32_66 = arith.constant 7 : i32
    %c0_i32_67 = arith.constant 0 : i32
    %80 = tpu.memref_slice %arg10[%c7_i32_66, %c0_i32_67] : memref<8x128xf32, #tpu.memory_space<vmem>> -> memref<1x128xf32, #tpu.memory_space<vmem>>
    %81 = tpu.memref_slice %arg11[%c7_i32_64] : memref<8x!tpu.dma_semaphore, #tpu.memory_space<semaphore_mem>> -> memref<1x!tpu.dma_semaphore, #tpu.memory_space<semaphore_mem>>
    %82 = tpu.memref_squeeze %81 : memref<1x!tpu.dma_semaphore, #tpu.memory_space<semaphore_mem>> -> memref<!tpu.dma_semaphore, #tpu.memory_space<semaphore_mem>>
    tpu.wait_dma2 semaphore(%82 : memref<!tpu.dma_semaphore, #tpu.memory_space<semaphore_mem>>) src(%79 : memref<1x128xf32, #tpu.memory_space<any>>) dst(%80 : memref<1x128xf32, #tpu.memory_space<vmem>>)
    %c0_68 = arith.constant 0 : index
    %c0_69 = arith.constant 0 : index
    %83 = vector.load %arg10[%c0_68, %c0_69] : memref<8x128xf32, #tpu.memory_space<vmem>>, vector<8x128xf32>
    %84 = arith.addf %83, %42 : vector<8x128xf32>
    %c0_70 = arith.constant 0 : index
    %c0_71 = arith.constant 0 : index
    %85 = vector.load %arg5[%c0_70, %c0_71] : memref<1x128xf32, #tpu.memory_space<vmem>>, vector<1x128xf32>
    %86 = vector.broadcast %85 : vector<1x128xf32> to vector<8x128xf32>
    %87 = arith.addf %84, %86 : vector<8x128xf32>
    %88 = arith.negf %87 : vector<8x128xf32>
    %89 = math.exp %88 : vector<8x128xf32>
    %cst_72 = arith.constant 1.000000e+00 : f32
    %90 = vector.broadcast %cst_72 : f32 to vector<8x128xf32>
    %91 = arith.addf %90, %89 : vector<8x128xf32>
    %92 = arith.divf %90, %91 : vector<8x128xf32>
    %93 = math.tanh %87 : vector<8x128xf32>
    %94 = vector.extract_strided_slice %92 {offsets = [0, 0], sizes = [8, 32], strides = [1, 1]} : vector<8x128xf32> to vector<8x32xf32>
    %95 = vector.extract_strided_slice %92 {offsets = [0, 32], sizes = [8, 32], strides = [1, 1]} : vector<8x128xf32> to vector<8x32xf32>
    %96 = vector.extract_strided_slice %93 {offsets = [0, 64], sizes = [8, 32], strides = [1, 1]} : vector<8x128xf32> to vector<8x32xf32>
    %97 = vector.extract_strided_slice %92 {offsets = [0, 96], sizes = [8, 32], strides = [1, 1]} : vector<8x128xf32> to vector<8x32xf32>
    %c0_73 = arith.constant 0 : index
    %c0_74 = arith.constant 0 : index
    %98 = vector.load %arg3[%c0_73, %c0_74] : memref<8x32xf32, #tpu.memory_space<vmem>>, vector<8x32xf32>
    %99 = arith.mulf %95, %98 : vector<8x32xf32>
    %100 = arith.mulf %94, %96 : vector<8x32xf32>
    %101 = arith.addf %99, %100 : vector<8x32xf32>
    %102 = math.tanh %101 : vector<8x32xf32>
    %103 = arith.mulf %97, %102 : vector<8x32xf32>
    %c0_75 = arith.constant 0 : index
    %c0_76 = arith.constant 0 : index
    %104 = vector.load %arg7[%c0_75, %c0_76] : memref<8x32xf32, #tpu.memory_space<vmem>>, vector<8x32xf32>
    tpu.vector_store %arg7[%c0_75, %c0_76], %103 {strides = array<i32>} : memref<8x32xf32, #tpu.memory_space<vmem>>, vector<8x32xf32>,
    %c0_77 = arith.constant 0 : index
    %c0_78 = arith.constant 0 : index
    %105 = vector.load %arg8[%c0_77, %c0_78] : memref<8x32xf32, #tpu.memory_space<vmem>>, vector<8x32xf32>
    tpu.vector_store %arg8[%c0_77, %c0_78], %101 {strides = array<i32>} : memref<8x32xf32, #tpu.memory_space<vmem>>, vector<8x32xf32>,
    %106 = arith.truncf %103 : vector<8x32xf32> to vector<8x32xbf16>
    %c0_79 = arith.constant 0 : index
    %c0_80 = arith.constant 0 : index
    %107 = vector.load %arg9[%c0_79, %c0_80] : memref<8x32xbf16, #tpu.memory_space<vmem>>, vector<8x32xbf16>
    tpu.vector_store %arg9[%c0_79, %c0_80], %106 {strides = array<i32>} : memref<8x32xbf16, #tpu.memory_space<vmem>>, vector<8x32xbf16>,
    return
  }
  func.func @transform_0(%arg0: i32, %arg1: memref<8xi32, #tpu.memory_space<smem>>) -> (i32, i32) {
    %c0_i32 = arith.constant 0 : i32
    %c0_i32_0 = arith.constant 0 : i32
    %c0_i32_1 = arith.constant 0 : i32
    return %c0_i32, %c0_i32_0 : i32, i32
  }
  func.func @transform_1(%arg0: i32, %arg1: memref<8xi32, #tpu.memory_space<smem>>) -> (i32, i32) {
    %c0_i32 = arith.constant 0 : i32
    %c0_i32_0 = arith.constant 0 : i32
    %c0_i32_1 = arith.constant 0 : i32
    return %c0_i32, %c0_i32_0 : i32, i32
  }
  func.func @transform_2(%arg0: i32, %arg1: memref<8xi32, #tpu.memory_space<smem>>) -> (i32, i32) {
    %c0_i32 = arith.constant 0 : i32
    %c0_i32_0 = arith.constant 0 : i32
    %c0_i32_1 = arith.constant 0 : i32
    return %c0_i32, %c0_i32_0 : i32, i32
  }
  func.func @transform_3(%arg0: i32, %arg1: memref<8xi32, #tpu.memory_space<smem>>) -> (i32, i32) {
    %c0_i32 = arith.constant 0 : i32
    %c0_i32_0 = arith.constant 0 : i32
    %c0_i32_1 = arith.constant 0 : i32
    return %c0_i32, %c0_i32_0 : i32, i32
  }
  func.func @transform_5(%arg0: i32, %arg1: memref<8xi32, #tpu.memory_space<smem>>) -> (i32, i32) {
    %c0_i32 = arith.constant 0 : i32
    %c0_i32_0 = arith.constant 0 : i32
    %c0_i32_1 = arith.constant 0 : i32
    return %c0_i32, %c0_i32_0 : i32, i32
  }
  func.func @transform_6(%arg0: i32, %arg1: memref<8xi32, #tpu.memory_space<smem>>) -> (i32, i32) {
    %c0_i32 = arith.constant 0 : i32
    %c0_i32_0 = arith.constant 0 : i32
    %c0_i32_1 = arith.constant 0 : i32
    return %c0_i32, %c0_i32_0 : i32, i32
  }
  func.func @transform_7(%arg0: i32, %arg1: memref<8xi32, #tpu.memory_space<smem>>) -> (i32, i32) {
    %c0_i32 = arith.constant 0 : i32
    %c0_i32_0 = arith.constant 0 : i32
    %c0_i32_1 = arith.constant 0 : i32
    return %c0_i32, %c0_i32_0 : i32, i32
  }
}

</mosaic_0001>

<llo_original>
// kernel: tpu_custom_call.1
$region0: #{tpu_custom_call.1}
  #allocation0 [shape = 'u32[]', space=smem, size = 0x4, offset = 0x4, fixed_abs, tag = 'smem constant byte address 0x4 - core index']
  #allocation1 [shape = 'u32[144,128]{1,0:T(1,128)}', space=vmem, size = 0x12000, scoped, tag = 'internal scratch']
  #allocation2 [shape = 'f32[8,128]{1,0:T(8,128)}', space=vmem, size = 0x1000, scoped, tag = 'scratch operand']
  #allocation3 [shape = 's32[8]{0}', space=sflag, size = 0x20, scoped, tag = 'scratch operand']
  #allocation4 [shape = 's32[1]{0}', space=sflag, size = 0x4, scoped, tag = 'scoped memory for tpu_custom_call.1']
  #allocation5 [shape = 'u8[512]{0}', space=smem, size = 0x200, scoped, tag = 'prefetched SMEM operand 0']
  #allocation16 [shape = 's32[]', space=sflag, size = 0x4, offset = 0, fixed_abs, tag = 'sflag constant byte address 0x0 - dummy sync flag']
  #allocation17 [shape = 's32[]', space=sflag, size = 0x4, offset = 0, fixed_abs, tag = 'sflag constant byte address 0x0 - dummy sync flag']
  #allocation18 [shape = 'u32[]', space=smem, size = 0x4, offset = 0x44, fixed_abs, tag = 'smem constant byte address 0x44 - assertion arg 0']
  #allocation19 [shape = 'u32[]', space=smem, size = 0x4, offset = 0x48, fixed_abs, tag = 'smem constant byte address 0x48 - assertion arg 1']
  #allocation20 [shape = 's32[]', space=sflag, size = 0x4, offset = 0, fixed_abs, tag = 'sflag constant byte address 0x0 - dummy sync flag']
  #allocation21 [shape = 's32[]', space=sflag, size = 0x4, offset = 0, fixed_abs, tag = 'sflag constant byte address 0x0 - dummy sync flag']
  #allocation22 [shape = 's32[]', space=sflag, size = 0x4, offset = 0, fixed_abs, tag = 'sflag constant byte address 0x0 - dummy sync flag']
  #allocation23 [shape = 's32[]', space=sflag, size = 0x4, offset = 0, fixed_abs, tag = 'sflag constant byte address 0x0 - dummy sync flag']
  #allocation24 [shape = 's32[]', space=sflag, size = 0x4, offset = 0, fixed_abs, tag = 'sflag constant byte address 0x0 - dummy sync flag']
  #allocation25 [shape = 's32[]', space=sflag, size = 0x4, offset = 0, fixed_abs, tag = 'sflag constant byte address 0x0 - dummy sync flag']
  #allocation26 [shape = 's32[]', space=sflag, size = 0x4, offset = 0, fixed_abs, tag = 'sflag constant byte address 0x0 - dummy sync flag']
  #allocation27 [shape = 's32[]', space=sflag, size = 0x4, offset = 0, fixed_abs, tag = 'sflag constant byte address 0x0 - dummy sync flag']
  #allocation28 [shape = 's32[]', space=sflag, size = 0x4, offset = 0, fixed_abs, tag = 'sflag constant byte address 0x0 - dummy sync flag']
  #allocation29 [shape = 's32[]', space=sflag, size = 0x4, offset = 0, fixed_abs, tag = 'sflag constant byte address 0x0 - dummy sync flag']
  #allocation30 [shape = 's32[]', space=sflag, size = 0x4, offset = 0, fixed_abs, tag = 'sflag constant byte address 0x0 - dummy sync flag']
  #allocation31 [shape = 's32[]', space=sflag, size = 0x4, offset = 0, fixed_abs, tag = 'sflag constant byte address 0x0 - dummy sync flag']
  #allocation32 [shape = 's32[]', space=sflag, size = 0x4, offset = 0, fixed_abs, tag = 'sflag constant byte address 0x0 - dummy sync flag']
  #allocation33 [shape = 's32[]', space=sflag, size = 0x4, offset = 0, fixed_abs, tag = 'sflag constant byte address 0x0 - dummy sync flag']
  %s0 = inlined_call_operand.hbm [shape: s32[8], index: 0, kind: input, shape index: {}]
  %s1 = inlined_call_operand.hbm [shape: f32[8,32], index: 1, kind: input, shape index: {}]
  %s2 = inlined_call_operand.hbm [shape: f32[8,32], index: 2, kind: input, shape index: {}]
  %s3 = inlined_call_operand.hbm [shape: f32[32,128], index: 3, kind: input, shape index: {}]
  %s4 = inlined_call_operand.vmem [shape: f32[1,128], index: 4, kind: input, shape index: {}]
  %s5 = inlined_call_operand.hbm [shape: f32[32,128], index: 5, kind: input, shape index: {}]
  %s6 = inlined_call_operand.hbm [shape: f32[8,32], index: 6, kind: output, shape index: {0}]
  %s7 = inlined_call_operand.hbm [shape: f32[8,32], index: 7, kind: output, shape index: {1}]
  %s8 = inlined_call_operand.hbm [shape: bf16[8,32], index: 8, kind: output, shape index: {2}]
  %9 = xla_tuple %s6, %s7, %s8
  %s10 = sld [smem:[#allocation0]]
  $region86: #{tpu_custom_call.1} parent=0
    _
  %s12 = ssub.s32 1, %s10
  %s13 = scalar_select 0, %s12, %s10
  %15 = dma.hbm_to_smem %s0, 16, [#allocation5], [#allocation4]
  %16 = dma.done [#allocation4], 16
  %17 = sfence
  $region1: #{tpu_custom_call.1} parent=0
    #allocation6 [shape = 'u8[4096]{0}', space=vmem, size = 0x1000, scoped, tag = 'input window, operand 1, single buffered']
    #allocation7 [shape = 's32[1]{0}', space=sflag, size = 0x4, scoped, tag = 'scoped memory for tpu_custom_call.1']
    #allocation8 [shape = 's32[1]{0}', space=sflag, size = 0x4, scoped, tag = 'scoped memory for tpu_custom_call.1']
    #allocation9 [shape = 'u8[4096]{0}', space=vmem, size = 0x1000, scoped, tag = 'input window, operand 2, single buffered']
    #allocation10 [shape = 's32[1]{0}', space=sflag, size = 0x4, scoped, tag = 'scoped memory for tpu_custom_call.1']
    #allocation11 [shape = 'u8[16384]{0}', space=vmem, size = 0x4000, scoped, tag = 'input window, operand 3, single buffered']
    #allocation12 [shape = 'u8[4096]{0}', space=vmem, size = 0x1000, scoped, tag = 'output window, operand 0, single buffered']
    #allocation13 [shape = 'u8[4096]{0}', space=vmem, size = 0x1000, scoped, tag = 'output window, operand 1, single buffered']
    #allocation14 [shape = 's32[1]{0}', space=sflag, size = 0x4, scoped, tag = 'scoped memory for tpu_custom_call.1']
    #allocation15 [shape = 'u8[2048]{0}', space=vmem, size = 0x800, scoped, tag = 'output window, operand 2, single buffered']
    %18 = vsyncpa [#allocation7], 0
    %19 = vsyncpa [#allocation10], 0
    %20 = vsyncpa [#allocation8], 0
    %21 = vsyncpa [#allocation14], 0
    // Predicated region
    $region2: #{tpu_custom_call.1} parent=1 // pred_check
      _
    $region3: #{tpu_custom_call.1} parent=1 // pred_check_branch
      %23 = sbr.rel (0) target = $region5
    $region4: #{tpu_custom_call.1} parent=1 // pred_region
      %s25 = ssub.s32 128, 128
      %26 = vsyncadd [#allocation7], %s25
      %s28 = sshll.u32 [#allocation6], 4
      %s29 = int_to_ptr.vmem [resolvable:$true] %s28
      %31 = dma.hbm_to_vmem [thread:$0]  %s1, 128, %s29, [#allocation7]
    $region5: #{tpu_custom_call.1} parent=1 // pred_fallthru
      _
    // Predicated region
    $region6: #{tpu_custom_call.1} parent=1 // pred_check
      _
    $region7: #{tpu_custom_call.1} parent=1 // pred_check_branch
      %33 = sbr.rel (0) target = $region9
    $region8: #{tpu_custom_call.1} parent=1 // pred_region
      %s35 = ssub.s32 128, 128
      %36 = vsyncadd [#allocation10], %s35
      %s38 = sshll.u32 [#allocation9], 4
      %s39 = int_to_ptr.vmem [resolvable:$true] %s38
      %41 = dma.hbm_to_vmem [thread:$0]  %s2, 128, %s39, [#allocation10]
    $region9: #{tpu_custom_call.1} parent=1 // pred_fallthru
      _
    // Predicated region
    $region10: #{tpu_custom_call.1} parent=1 // pred_check
      _
    $region11: #{tpu_custom_call.1} parent=1 // pred_check_branch
      %43 = sbr.rel (0) target = $region13
    $region12: #{tpu_custom_call.1} parent=1 // pred_region
      %s45 = ssub.s32 512, 512
      %46 = vsyncadd [#allocation10], %s45
      %s47 = sshll.u32 [#allocation11], 4
      %s48 = int_to_ptr.vmem [resolvable:$true] %s47
      %53 = dma.hbm_to_vmem [thread:$0]  %s3, 512, %s48, [#allocation10], 128, 128, 8
    $region13: #{tpu_custom_call.1} parent=1 // pred_fallthru
      _
    // Predicated region
    $region14: #{tpu_custom_call.1} parent=1 // pred_check
      _
    $region15: #{tpu_custom_call.1} parent=1 // pred_check_branch
      %55 = sbr.rel (0) target = $region17
    $region16: #{tpu_custom_call.1} parent=1 // pred_region
      _
    $region17: #{tpu_custom_call.1} parent=1 // pred_fallthru
      _
    // Predicated region
    $region18: #{tpu_custom_call.1} parent=1 // pred_check
      _
    $region19: #{tpu_custom_call.1} parent=1 // pred_check_branch
      %57 = sbr.rel (0) target = $region21
    $region20: #{tpu_custom_call.1} parent=1 // pred_region
      %58 = dma.done [#allocation7], 128
    $region21: #{tpu_custom_call.1} parent=1 // pred_fallthru
      _
    // Predicated region
    $region22: #{tpu_custom_call.1} parent=1 // pred_check
      _
    $region23: #{tpu_custom_call.1} parent=1 // pred_check_branch
      %60 = sbr.rel (0) target = $region25
    $region24: #{tpu_custom_call.1} parent=1 // pred_region
      %61 = dma.done [#allocation10], 128
    $region25: #{tpu_custom_call.1} parent=1 // pred_fallthru
      _
    // Predicated region
    $region26: #{tpu_custom_call.1} parent=1 // pred_check
      _
    $region27: #{tpu_custom_call.1} parent=1 // pred_check_branch
      %63 = sbr.rel (0) target = $region29
    $region28: #{tpu_custom_call.1} parent=1 // pred_region
      %64 = dma.done [#allocation10], 512
    $region29: #{tpu_custom_call.1} parent=1 // pred_fallthru
      _
    %s65 = sld [smem:[#allocation5]]
    %s66 = smul.addr %s65, 16
    %s67 = scalar_lea.hbm %s5, %s66
    // Predicated region
    $region30: #{tpu_custom_call.1} parent=1 // pred_check
      _
    $region31: #{tpu_custom_call.1} parent=1 // pred_check_branch
      %69 = sbr.rel target = $region33
    $region32: #{tpu_custom_call.1} parent=1 // pred_region
      %70 = sst [smem:[#allocation18]] [#allocation17]
      %71 = sst [smem:[#allocation19]] [#allocation16]
    $region33: #{tpu_custom_call.1} parent=1 // pred_fallthru
      _
    %73 = shalt.err (0)
    %s75 = sshll.u32 [#allocation2], 4
    %s76 = int_to_ptr.vmem [resolvable:$true] %s75
    %78 = dma.hbm_to_vmem [thread:$0]  %s67, 16, %s76, [#allocation3]
    %s79 = sld [smem:[#allocation5 + $0x1]]
    %s80 = smul.addr %s79, 16
    %s81 = scalar_lea.hbm %s5, %s80
    %s82 = scalar_lea.vmem [#allocation2], 1
    %s83 = scalar_lea.sflag [#allocation3], 1
    // Predicated region
    $region34: #{tpu_custom_call.1} parent=1 // pred_check
      _
    $region35: #{tpu_custom_call.1} parent=1 // pred_check_branch
      %85 = sbr.rel target = $region37
    $region36: #{tpu_custom_call.1} parent=1 // pred_region
      %86 = sst [smem:[#allocation18]] [#allocation21]
      %87 = sst [smem:[#allocation19]] [#allocation20]
    $region37: #{tpu_custom_call.1} parent=1 // pred_fallthru
      _
    %89 = shalt.err (0)
    %s91 = sshll.u32 %s82, 4
    %s92 = int_to_ptr.vmem [resolvable:$true] %s91
    %94 = dma.hbm_to_vmem [thread:$0]  %s81, 16, %s92, %s83
    %s95 = sld [smem:[#allocation5 + $0x2]]
    %s96 = smul.addr %s95, 16
    %s97 = scalar_lea.hbm %s5, %s96
    %s98 = scalar_lea.vmem [#allocation2], 2
    %s99 = scalar_lea.sflag [#allocation3], 2
    // Predicated region
    $region38: #{tpu_custom_call.1} parent=1 // pred_check
      _
    $region39: #{tpu_custom_call.1} parent=1 // pred_check_branch
      %101 = sbr.rel target = $region41
    $region40: #{tpu_custom_call.1} parent=1 // pred_region
      %102 = sst [smem:[#allocation18]] [#allocation23]
      %103 = sst [smem:[#allocation19]] [#allocation22]
    $region41: #{tpu_custom_call.1} parent=1 // pred_fallthru
      _
    %105 = shalt.err (0)
    %s107 = sshll.u32 %s98, 4
    %s108 = int_to_ptr.vmem [resolvable:$true] %s107
    %110 = dma.hbm_to_vmem [thread:$0]  %s97, 16, %s108, %s99
    %s111 = sld [smem:[#allocation5 + $0x3]]
    %s112 = smul.addr %s111, 16
    %s113 = scalar_lea.hbm %s5, %s112
    %s114 = scalar_lea.vmem [#allocation2], 3
    %s115 = scalar_lea.sflag [#allocation3], 3
    // Predicated region
    $region42: #{tpu_custom_call.1} parent=1 // pred_check
      _
    $region43: #{tpu_custom_call.1} parent=1 // pred_check_branch
      %117 = sbr.rel target = $region45
    $region44: #{tpu_custom_call.1} parent=1 // pred_region
      %118 = sst [smem:[#allocation18]] [#allocation25]
      %119 = sst [smem:[#allocation19]] [#allocation24]
    $region45: #{tpu_custom_call.1} parent=1 // pred_fallthru
      _
    %121 = shalt.err (0)
    %s123 = sshll.u32 %s114, 4
    %s124 = int_to_ptr.vmem [resolvable:$true] %s123
    %126 = dma.hbm_to_vmem [thread:$0]  %s113, 16, %s124, %s115
    %s127 = sld [smem:[#allocation5 + $0x4]]
    %s128 = smul.addr %s127, 16
    %s129 = scalar_lea.hbm %s5, %s128
    %s130 = scalar_lea.vmem [#allocation2], 4
    %s131 = scalar_lea.sflag [#allocation3], 4
    // Predicated region
    $region46: #{tpu_custom_call.1} parent=1 // pred_check
      _
    $region47: #{tpu_custom_call.1} parent=1 // pred_check_branch
      %133 = sbr.rel target = $region49
    $region48: #{tpu_custom_call.1} parent=1 // pred_region
      %134 = sst [smem:[#allocation18]] [#allocation27]
      %135 = sst [smem:[#allocation19]] [#allocation26]
    $region49: #{tpu_custom_call.1} parent=1 // pred_fallthru
      _
    %137 = shalt.err (0)
    %s139 = sshll.u32 %s130, 4
    %s140 = int_to_ptr.vmem [resolvable:$true] %s139
    %142 = dma.hbm_to_vmem [thread:$0]  %s129, 16, %s140, %s131
    %s143 = sld [smem:[#allocation5 + $0x5]]
    %s144 = smul.addr %s143, 16
    %s145 = scalar_lea.hbm %s5, %s144
    %s146 = scalar_lea.vmem [#allocation2], 5
    %s147 = scalar_lea.sflag [#allocation3], 5
    // Predicated region
    $region50: #{tpu_custom_call.1} parent=1 // pred_check
      _
    $region51: #{tpu_custom_call.1} parent=1 // pred_check_branch
      %149 = sbr.rel target = $region53
    $region52: #{tpu_custom_call.1} parent=1 // pred_region
      %150 = sst [smem:[#allocation18]] [#allocation29]
      %151 = sst [smem:[#allocation19]] [#allocation28]
    $region53: #{tpu_custom_call.1} parent=1 // pred_fallthru
      _
    %153 = shalt.err (0)
    %s155 = sshll.u32 %s146, 4
    %s156 = int_to_ptr.vmem [resolvable:$true] %s155
    %158 = dma.hbm_to_vmem [thread:$0]  %s145, 16, %s156, %s147
    %s159 = sld [smem:[#allocation5 + $0x6]]
    %s160 = smul.addr %s159, 16
    %s161 = scalar_lea.hbm %s5, %s160
    %s162 = scalar_lea.vmem [#allocation2], 6
    %s163 = scalar_lea.sflag [#allocation3], 6
    // Predicated region
    $region54: #{tpu_custom_call.1} parent=1 // pred_check
      _
    $region55: #{tpu_custom_call.1} parent=1 // pred_check_branch
      %165 = sbr.rel target = $region57
    $region56: #{tpu_custom_call.1} parent=1 // pred_region
      %166 = sst [smem:[#allocation18]] [#allocation31]
      %167 = sst [smem:[#allocation19]] [#allocation30]
    $region57: #{tpu_custom_call.1} parent=1 // pred_fallthru
      _
    %169 = shalt.err (0)
    %s171 = sshll.u32 %s162, 4
    %s172 = int_to_ptr.vmem [resolvable:$true] %s171
    %174 = dma.hbm_to_vmem [thread:$0]  %s161, 16, %s172, %s163
    %s175 = sld [smem:[#allocation5 + $0x7]]
    %s176 = smul.addr %s175, 16
    %s177 = scalar_lea.hbm %s5, %s176
    %s178 = scalar_lea.vmem [#allocation2], 7
    %s179 = scalar_lea.sflag [#allocation3], 7
    // Predicated region
    $region58: #{tpu_custom_call.1} parent=1 // pred_check
      _
    $region59: #{tpu_custom_call.1} parent=1 // pred_check_branch
      %181 = sbr.rel target = $region61
    $region60: #{tpu_custom_call.1} parent=1 // pred_region
      %182 = sst [smem:[#allocation18]] [#allocation33]
      %183 = sst [smem:[#allocation19]] [#allocation32]
    $region61: #{tpu_custom_call.1} parent=1 // pred_fallthru
      _
    %185 = shalt.err (0)
    %s187 = sshll.u32 %s178, 4
    %s188 = int_to_ptr.vmem [resolvable:$true] %s187
    %190 = dma.hbm_to_vmem [thread:$0]  %s177, 16, %s188, %s179
    %v191 = vld [vmem:[#allocation6] sm:$0xff]
    %v192 = vld [vmem:[#allocation11] sm:$0xff]
    %v193 = vld [vmem:[#allocation11 + $0x8] sm:$0xff]
    %v194 = vld [vmem:[#allocation11 + $0x10] sm:$0xff]
    %v195 = vld [vmem:[#allocation11 + $0x18] sm:$0xff]
    %vm196 = vcmask 261120
    %v198 = vsel %vm196, %v191, 0
    %200 = vmatprep.subr.mxu0 0.0
    %201 = vmatpush1.msra.mxu0 %v192
    %202 = vmatprep.subr.mxu0 0.0
    %203 = vmatpush1.msra.mxu0 %v193
    %204 = vmatprep.subr.mxu0 0.0
    %205 = vmatpush1.msra.mxu0 %v194
    %206 = vmatprep.subr.mxu0 0.0
    %207 = vmatpush1.msra.mxu0 %v195
    %208 = vmatprep.subr.mxu0 0.0
    %209 = vmatpush1.msra.mxu0 0.0
    %210 = vmatprep.subr.mxu0 0.0
    %211 = vmatpush1.msra.mxu0 0.0
    %212 = vmatprep.subr.mxu0 0.0
    %213 = vmatpush1.msra.mxu0 0.0
    %214 = vmatprep.subr.mxu0 0.0
    %215 = vmatpush1.msra.mxu0 0.0
    %216 = vmatprep.subr.mxu0 0.0
    %217 = vmatpush1.msra.mxu0 0.0
    %218 = vmatprep.subr.mxu0 0.0
    %219 = vmatpush1.msra.mxu0 0.0
    %220 = vmatprep.subr.mxu0 0.0
    %221 = vmatpush1.msra.mxu0 0.0
    %222 = vmatprep.subr.mxu0 0.0
    %223 = vmatpush1.msra.mxu0 0.0
    %224 = vmatprep.subr.mxu0 0.0
    %225 = vmatpush1.msra.mxu0 0.0
    %226 = vmatprep.subr.mxu0 0.0
    %227 = vmatpush1.msra.mxu0 0.0
    %228 = vmatprep.subr.mxu0 0.0
    %229 = vmatpush1.msra.mxu0 0.0
    %230 = vmatprep.subr.mxu0 0.0
    %231 = vmatpush1.msra.mxu0 0.0
    %232 = vmatprep.subr.mxu0 0.0
    %233 = vmatpush1.msra.mxu0 0.0
    %234 = vmatprep.subr.mxu0 0.0
    %235 = vmatpush1.msra.mxu0 0.0
    %236 = vmatprep.subr.mxu0 0.0
    %237 = vmatpush1.msra.mxu0 0.0
    %238 = vmatprep.subr.mxu0 0.0
    %239 = vmatpush1.msra.mxu0 0.0
    %240 = vmatprep.subr.mxu0 0.0
    %241 = vmatpush1.msra.mxu0 0.0
    %242 = vmatprep.subr.mxu0 0.0
    %243 = vmatpush1.msra.mxu0 0.0
    %244 = vmatprep.subr.mxu0 0.0
    %245 = vmatpush1.msra.mxu0 0.0
    %246 = vmatprep.subr.mxu0 0.0
    %247 = vmatpush1.msra.mxu0 0.0
    %248 = vmatprep.subr.mxu0 0.0
    %249 = vmatpush1.msra.mxu0 0.0
    %250 = vmatprep.subr.mxu0 0.0
    %251 = vmatpush1.msra.mxu0 0.0
    %252 = vmatprep.subr.mxu0 0.0
    %253 = vmatpush1.msra.mxu0 0.0
    %254 = vmatprep.subr.mxu0 0.0
    %255 = vmatpush1.msra.mxu0 0.0
    %256 = vmatprep.subr.mxu0 0.0
    %257 = vmatpush1.msra.mxu0 0.0
    %258 = vmatprep.subr.mxu0 0.0
    %259 = vmatpush1.msra.mxu0 0.0
    %260 = vmatprep.subr.mxu0 0.0
    %261 = vmatpush1.msra.mxu0 0.0
    %262 = vmatprep.subr.mxu0 0.0
    %263 = vmatpush1.msra.mxu0 0.0
    %264 = vmatprep.mubr.f32.mxu0 0.0
    %265 = vmatmul.mubr.f32.gmra.mrb[0].mxu0 %v198
    %v266 = vpop.f32.mrb[0].mxu0
    %v267 = vadd.f32 0.0, %v266
    %v268 = vpop.f32.mrb[0].mxu0
    %269 = vdwg.mxu0
    %s270 = sld [smem:[#allocation5]]
    %s271 = smul.u32 1, 1
    %s272 = sshll.u32 %s271, 4
    %273 = dma.done [#allocation3], %s272
    %s274 = sld [smem:[#allocation5 + $0x1]]
    %s275 = sshll.u32 %s271, 4
    %276 = dma.done %s83, %s275
    %s277 = sld [smem:[#allocation5 + $0x2]]
    %s278 = sshll.u32 %s271, 4
    %279 = dma.done %s99, %s278
    %s280 = sld [smem:[#allocation5 + $0x3]]
    %s281 = sshll.u32 %s271, 4
    %282 = dma.done %s115, %s281
    %s283 = sld [smem:[#allocation5 + $0x4]]
    %s284 = sshll.u32 %s271, 4
    %285 = dma.done %s131, %s284
    %s286 = sld [smem:[#allocation5 + $0x5]]
    %s287 = sshll.u32 %s271, 4
    %288 = dma.done %s147, %s287
    %s289 = sld [smem:[#allocation5 + $0x6]]
    %s290 = sshll.u32 %s271, 4
    %291 = dma.done %s163, %s290
    %s292 = sld [smem:[#allocation5 + $0x7]]
    %s293 = sshll.u32 %s271, 4
    %294 = dma.done %s179, %s293
    %v295 = vld [vmem:[#allocation2] sm:$0xff]
    %v296 = vadd.f32 %v295, %v267
    %v297 = vld [vmem:[%s4] sm:$0x1]
    %v299 = vlaneseq
    %v300 = vshrl.u32 %v299, 7
    %v301 = vsub.s32 0, %v300
    %v302 = vrot.slane %v297, %v301
    %v304 = vadd.f32 %v296, %v302
    %v305 = vxor.u32 %v304, 2147483648
    %v306 = vmul.f32 %v305, 1.442695
    %v307 = vpow.pop %v306
    %v308 = vadd.f32 %v307, 1.0
    %v309 = vrcp.pop %v308
    %v310 = vmul.f32 1.0, %v309
    %v311 = vtanh.pop %v304
    %v312 = vld [vmem:[#allocation9] sm:$0xff]
    %314 = vrot.lane.b32.xlu0 %v312, 32
    %v315 = vpop.permute.xlu0 %314
    %v317 = vmul.f32 %v310, %v315
    %319 = vrot.lane.b32.xlu0 %v311, 64
    %v320 = vpop.permute.xlu0 %319
    %v322 = vmul.f32 %v310, %v320
    %324 = vrot.lane.b32.xlu0 %v322, 32
    %v325 = vpop.permute.xlu0 %324
    %v327 = vadd.f32 %v317, %v325
    %v328 = vtanh.pop %v327
    %330 = vrot.lane.b32.xlu0 %v328, 64
    %v331 = vpop.permute.xlu0 %330
    %v333 = vmul.f32 %v310, %v331
    %335 = vrot.lane.b32.xlu0 %v333, 32
    %v336 = vpop.permute.xlu0 %335
    %338 = vst.msk [vmem:[#allocation12] sm:$0xff] %vm196, %v336
    %340 = vrot.lane.b32.xlu0 %v327, 96
    %v341 = vpop.permute.xlu0 %340
    %343 = vst.msk [vmem:[#allocation13] sm:$0xff] %vm196, %v341
    %v344 = vpack.c.bf16 %v333, %v333
    %v346 = vunpack.c.l.b16 %v344
    %v347 = vpack.c.b16 %v346, %v346
    %348 = vrot.lane.b32.xlu0 %v347, 32
    %v349 = vpop.permute.xlu0 %348
    %vm351 = vcmask 257024
    %352 = vst.msk [vmem:[#allocation15] sm:$0xf] %vm351, %v349
    // Predicated region
    $region62: #{tpu_custom_call.1} parent=1 // pred_check
      _
    $region63: #{tpu_custom_call.1} parent=1 // pred_check_branch
      %354 = sbr.rel (0) target = $region65
    $region64: #{tpu_custom_call.1} parent=1 // pred_region
      %s356 = ssub.s32 128, 128
      %357 = vsyncadd [#allocation8], %s356
      %s359 = sshll.u32 [#allocation12], 4
      %s360 = int_to_ptr.vmem [resolvable:$true] %s359
      %362 = dma.vmem_to_hbm [thread:$0]  %s360, 128, %s6, [#allocation8]
    $region65: #{tpu_custom_call.1} parent=1 // pred_fallthru
      _
    // Predicated region
    $region66: #{tpu_custom_call.1} parent=1 // pred_check
      _
    $region67: #{tpu_custom_call.1} parent=1 // pred_check_branch
      %364 = sbr.rel (0) target = $region69
    $region68: #{tpu_custom_call.1} parent=1 // pred_region
      %s366 = ssub.s32 128, 128
      %367 = vsyncadd [#allocation14], %s366
      %s369 = sshll.u32 [#allocation13], 4
      %s370 = int_to_ptr.vmem [resolvable:$true] %s369
      %372 = dma.vmem_to_hbm [thread:$0]  %s370, 128, %s7, [#allocation14]
    $region69: #{tpu_custom_call.1} parent=1 // pred_fallthru
      _
    // Predicated region
    $region70: #{tpu_custom_call.1} parent=1 // pred_check
      _
    $region71: #{tpu_custom_call.1} parent=1 // pred_check_branch
      %374 = sbr.rel (0) target = $region73
    $region72: #{tpu_custom_call.1} parent=1 // pred_region
      %s376 = ssub.s32 64, 64
      %377 = vsyncadd [#allocation14], %s376
      %s379 = sshll.u32 [#allocation15], 4
      %s380 = int_to_ptr.vmem [resolvable:$true] %s379
      %382 = dma.vmem_to_hbm [thread:$0]  %s380, 64, %s8, [#allocation14]
    $region73: #{tpu_custom_call.1} parent=1 // pred_fallthru
      _
    // Predicated region
    $region74: #{tpu_custom_call.1} parent=1 // pred_check
      _
    $region75: #{tpu_custom_call.1} parent=1 // pred_check_branch
      %384 = sbr.rel (0) target = $region77
    $region76: #{tpu_custom_call.1} parent=1 // pred_region
      %385 = dma.done [#allocation8], 128
    $region77: #{tpu_custom_call.1} parent=1 // pred_fallthru
      _
    // Predicated region
    $region78: #{tpu_custom_call.1} parent=1 // pred_check
      _
    $region79: #{tpu_custom_call.1} parent=1 // pred_check_branch
      %387 = sbr.rel (0) target = $region81
    $region80: #{tpu_custom_call.1} parent=1 // pred_region
      %388 = dma.done [#allocation14], 128
    $region81: #{tpu_custom_call.1} parent=1 // pred_fallthru
      _
    // Predicated region
    $region82: #{tpu_custom_call.1} parent=1 // pred_check
      _
    $region83: #{tpu_custom_call.1} parent=1 // pred_check_branch
      %390 = sbr.rel (0) target = $region85
    $region84: #{tpu_custom_call.1} parent=1 // pred_region
      %391 = dma.done [#allocation14], 64
    $region85: #{tpu_custom_call.1} parent=1 // pred_fallthru
      _
    %392 = vsyncpa [#allocation7], 1
    %393 = vsyncpa [#allocation10], 1
    %394 = vsyncpa [#allocation8], 1
    %395 = vsyncpa [#allocation14], 1
  %396 = vsyncmov [#allocation3]
  %s397 = vpop.sfrf %396
  %p398 = scmp.eq.s32.totalorder %s397, 0
  %p399 = pneg %p398
  %401 = shalt.err (%p399)
  %s402 = scalar_lea.sflag [#allocation3], 1
  %403 = vsyncmov %s402
  %s404 = vpop.sfrf %403
  %p405 = scmp.eq.s32.totalorder %s404, 0
  %p406 = pneg %p405
  %408 = shalt.err (%p406)
  %s409 = scalar_lea.sflag [#allocation3], 2
  %410 = vsyncmov %s409
  %s411 = vpop.sfrf %410
  %p412 = scmp.eq.s32.totalorder %s411, 0
  %p413 = pneg %p412
  %415 = shalt.err (%p413)
  %s416 = scalar_lea.sflag [#allocation3], 3
  %417 = vsyncmov %s416
  %s418 = vpop.sfrf %417
  %p419 = scmp.eq.s32.totalorder %s418, 0
  %p420 = pneg %p419
  %422 = shalt.err (%p420)
  %s423 = scalar_lea.sflag [#allocation3], 4
  %424 = vsyncmov %s423
  %s425 = vpop.sfrf %424
  %p426 = scmp.eq.s32.totalorder %s425, 0
  %p427 = pneg %p426
  %429 = shalt.err (%p427)
  %s430 = scalar_lea.sflag [#allocation3], 5
  %431 = vsyncmov %s430
  %s432 = vpop.sfrf %431
  %p433 = scmp.eq.s32.totalorder %s432, 0
  %p434 = pneg %p433
  %436 = shalt.err (%p434)
  %s437 = scalar_lea.sflag [#allocation3], 6
  %438 = vsyncmov %s437
  %s439 = vpop.sfrf %438
  %p440 = scmp.eq.s32.totalorder %s439, 0
  %p441 = pneg %p440
  %443 = shalt.err (%p441)
  %s444 = scalar_lea.sflag [#allocation3], 7
  %445 = vsyncmov %s444
  %s446 = vpop.sfrf %445
  %p447 = scmp.eq.s32.totalorder %s446, 0
  %p448 = pneg %p447
  %450 = shalt.err (%p448)

</llo_original>
